<compile_context>
chip_gen: v6e
topology: v6e:2x2x1
jax: 0.10.0
libtpu: 0.0.40
codegen_flags: <defaults>
</compile_context>

<pallas_src>
import jax
import jax.numpy as jnp
from jax.experimental import pallas as pl
from jax.experimental.pallas import tpu as pltpu


# ---------------------------------------------------------------------------
# Kernels
# ---------------------------------------------------------------------------

def _row0_matvec_kernel(x1row_ref, x2_ref, out_ref):
    """Single-shot kernel (whole K in one tile).

    x1row_ref: (1, K)   the row x1[0, :, 0]  (DMA'd once; constant index_map)
    x2_ref   : (TN, K)  one N-tile of x2[0]
    out_ref  : (TN, 1)  f32 output block
    """
    prod = x2_ref[...].astype(jnp.float32) * x1row_ref[...].astype(jnp.float32)
    out_ref[...] = jnp.sum(prod, axis=-1, keepdims=True)


def _row0_matvec_acc_kernel(x1row_ref, x2_ref, out_ref):
    """K-tiled kernel; accumulates directly into the resident f32 out block."""
    k = pl.program_id(1)
    prod = x2_ref[...].astype(jnp.float32) * x1row_ref[...].astype(jnp.float32)
    psum = jnp.sum(prod, axis=-1, keepdims=True)

    @pl.when(k == 0)
    def _first():
        out_ref[...] = psum

    @pl.when(k > 0)
    def _rest():
        out_ref[...] += psum


# ---------------------------------------------------------------------------
# Tiling helpers
# ---------------------------------------------------------------------------

_X2_TILE_BYTES = 4 * 1024 * 1024     # per x2 tile; pipeline double-buffers it
_VMEM_LIMIT = 32 * 1024 * 1024       # safe scoped-VMEM budget on v5e/v6e/v7x


def _sublane_align(dtype) -> int:
    """Native sublane packing: 8 for 32-bit, 16 for 16-bit, 32 for 8-bit."""
    return max(8, 32 // jnp.dtype(dtype).itemsize)


def _largest_divisor_tile(dim, max_tile, align):
    """Largest tile <= max_tile that is a multiple of `align` and divides `dim`;
    falls back to the full dim (always a legal block shape)."""
    if dim <= max_tile:
        return dim
    t = (max_tile // align) * align
    while t >= align:
        if dim % t == 0:
            return t
        t -= align
    return dim


# ---------------------------------------------------------------------------
# Wrapper (the PyTorch forward)
# ---------------------------------------------------------------------------

def model_forward(x1, x2, *, tn=None, tk=None):
    """x1: (1, K, M), x2: (1, N, K)  ->  (N,)  == torch a[0][0]."""
    B, K, M = x1.shape
    B2, N, K2 = x2.shape
    assert B == 1 and B2 == 1 and K == K2, "shape mismatch vs. torch.bmm semantics"

    out_dtype = jnp.result_type(x1.dtype, x2.dtype)

    # Tiny problems (e.g. the original 1x2x2): a pallas_call is pure overhead.
    if tn is None and tk is None and N * K <= 16384:
        return jnp.einsum("k,nk->n", x1[0, :, 0], x2[0],
                          precision=jax.lax.Precision.HIGHEST).astype(out_dtype)

    itemsize = jnp.dtype(x2.dtype).itemsize
    n_align = _sublane_align(x2.dtype)

    # --- TK: collapse the reduction axis whenever a reasonable TN still fits.
    if tk is not None and K % tk == 0 and (tk % 128 == 0 or tk == K):
        TK = tk
    elif K * n_align * itemsize <= _X2_TILE_BYTES:
        TK = K
    else:
        TK = _largest_divisor_tile(K, 32768, 128)

    # --- TN: fill the per-tile byte budget; keep >= 2 N blocks for v7x megacore.
    max_tn = max(n_align, _X2_TILE_BYTES // (TK * itemsize))
    if tn is not None and N % tn == 0 and (tn % n_align == 0 or tn == N):
        TN = tn
    else:
        TN = _largest_divisor_tile(N, max_tn, n_align)
        if TN == N and N > 512:
            TN = _largest_divisor_tile(N, N // 2, n_align)

    assert N % TN == 0 and K % TK == 0
    grid_n, grid_k = N // TN, K // TK

    # x1 row sliced once in the wrapper: (1, K). Tiny, DMA'd into VMEM once.
    x1row = jnp.reshape(x1[0, :, 0], (1, K))

    if grid_k == 1:
        kernel = _row0_matvec_kernel
        grid = (grid_n,)
        in_specs = [
            pl.BlockSpec((1, K), lambda n: (0, 0)),             # constant -> 1 DMA
            pl.BlockSpec((None, TN, K), lambda n: (0, n, 0)),   # batch squeezed
        ]
        out_specs = pl.BlockSpec((TN, 1), lambda n: (n, 0))
        dim_sem = ("parallel",)
    else:
        kernel = _row0_matvec_acc_kernel
        grid = (grid_n, grid_k)                                  # K innermost
        in_specs = [
            pl.BlockSpec((1, TK), lambda n, k: (0, k)),
            pl.BlockSpec((None, TN, TK), lambda n, k: (0, n, k)),
        ]
        out_specs = pl.BlockSpec((TN, 1), lambda n, k: (n, 0))   # resident over k
        dim_sem = ("parallel", "arbitrary")

    out = pl.pallas_call(
        kernel,
        out_shape=jax.ShapeDtypeStruct((N, 1), jnp.float32),
        grid_spec=pltpu.PrefetchScalarGridSpec(
            num_scalar_prefetch=0,
            grid=grid,
            in_specs=in_specs,
            out_specs=out_specs,
        ),
        compiler_params=pltpu.CompilerParams(
            dimension_semantics=dim_sem,
            vmem_limit_bytes=_VMEM_LIMIT,
        ),
    )(x1row, x2)

    return out[:, 0].astype(out_dtype)


# ---------------------------------------------------------------------------
# Test
# ---------------------------------------------------------------------------

if __name__ == "__main__":
    key = jax.random.PRNGKey(0)
    k1, k2 = jax.random.split(key)

    def ref_forward(a1, a2):
        a = jnp.einsum("bkm,bnk->bmn", a1, a2,
                       precision=jax.lax.Precision.HIGHEST)
        return a[0, 0]

    # Small but non-trivial shapes that exercise the tiled Pallas path.
    B, K, M, N = 1, 256, 8, 1024
    x1 = jax.random.normal(k1, (B, K, M), dtype=jnp.float32)
    x2 = jax.random.normal(k2, (B, N, K), dtype=jnp.float32)
    b_ref = ref_forward(x1, x2)

    # 1) Auto-tiled path: K collapsed, N split into >= 2 parallel blocks.
    b1 = jax.block_until_ready(model_forward(x1, x2))
    assert b1.shape == b_ref.shape == (N,)
    assert jnp.allclose(b1, b_ref, atol=1e-3, rtol=1e-3), float(
        jnp.max(jnp.abs(b1 - b_ref)))

    # 2) Forced small tiles: exercises the K-accumulating kernel variant.
    b2 = jax.block_until_ready(model_forward(x1, x2, tn=256, tk=128))
    assert jnp.allclose(b2, b_ref, atol=1e-3, rtol=1e-3), float(
        jnp.max(jnp.abs(b2 - b_ref)))

    # 3) Original module's tiny shape (1, 2, 2): served by the XLA fast path.
    x1s = jax.random.normal(k1, (1, 2, 2), dtype=jnp.float32)
    x2s = jax.random.normal(k2, (1, 2, 2), dtype=jnp.float32)
    bs = jax.block_until_ready(model_forward(x1s, x2s))
    assert jnp.allclose(bs, ref_forward(x1s, x2s), atol=1e-5, rtol=1e-5)

    print("KERNEL_OK")
</pallas_src>

<mosaic_0001>
module attributes {stable_mosaic.version = 11 : i64} {
  func.func @_row0_matvec_kernel(%arg0: i32, %arg1: memref<1x256xf32, #tpu.memory_space<vmem>>, %arg2: memref<1x512x256xf32, #tpu.memory_space<vmem>>, %arg3: memref<512x1xf32, #tpu.memory_space<vmem>>) attributes {dimension_semantics = [#tpu.dimension_semantics<parallel>], iteration_bounds = array<i64: 2>, scalar_prefetch = 0 : i64, scratch_operands = 0 : i64, tpu.core_type = #tpu.core_type<tc>, window_params = [{pipeline_mode = #tpu.pipeline_mode<synchronous>, transform_indices = @transform_0, window_bounds = array<i64: 1, 256>}, {transform_indices = @transform_1, window_bounds = array<i64: 1, 512, 256>}, {transform_indices = @transform_2, window_bounds = array<i64: 512, 1>}]} {
    %c0 = arith.constant 0 : index
    %c0_0 = arith.constant 0 : index
    %c0_1 = arith.constant 0 : index
    %0 = vector.load %arg2[%c0, %c0_0, %c0_1] : memref<1x512x256xf32, #tpu.memory_space<vmem>>, vector<1x512x256xf32>
    %1 = vector.shape_cast %0 : vector<1x512x256xf32> to vector<512x256xf32>
    %c0_2 = arith.constant 0 : index
    %c0_3 = arith.constant 0 : index
    %2 = vector.load %arg1[%c0_2, %c0_3] : memref<1x256xf32, #tpu.memory_space<vmem>>, vector<1x256xf32>
    %3 = vector.broadcast %2 : vector<1x256xf32> to vector<512x256xf32>
    %4 = arith.mulf %1, %3 : vector<512x256xf32>
    %cst = arith.constant dense<0.000000e+00> : vector<512xf32>
    %5 = vector.multi_reduction <add>, %4, %cst [1] : vector<512x256xf32> to vector<512xf32>
    %6 = vector.shape_cast %5 : vector<512xf32> to vector<512x1xf32>
    %c0_4 = arith.constant 0 : index
    %c0_5 = arith.constant 0 : index
    %7 = vector.load %arg3[%c0_4, %c0_5] : memref<512x1xf32, #tpu.memory_space<vmem>>, vector<512x1xf32>
    tpu.vector_store %arg3[%c0_4, %c0_5], %6 {strides = array<i32>} : memref<512x1xf32, #tpu.memory_space<vmem>>, vector<512x1xf32>,
    return
  }
  func.func @transform_0(%arg0: i32) -> (i32, i32) {
    %c0_i32 = arith.constant 0 : i32
    %c0_i32_0 = arith.constant 0 : i32
    %c0_i32_1 = arith.constant 0 : i32
    return %c0_i32, %c0_i32_0 : i32, i32
  }
  func.func @transform_1(%arg0: i32) -> (i32, i32, i32) {
    %c0_i32 = arith.constant 0 : i32
    %c0_i32_0 = arith.constant 0 : i32
    %c0_i32_1 = arith.constant 0 : i32
    return %c0_i32, %arg0, %c0_i32_0 : i32, i32, i32
  }
  func.func @transform_2(%arg0: i32) -> (i32, i32) {
    %c0_i32 = arith.constant 0 : i32
    %c0_i32_0 = arith.constant 0 : i32
    return %arg0, %c0_i32 : i32, i32
  }
}

</mosaic_0001>

<llo_original>
// kernel: tpu_custom_call.1
$region0: #{tpu_custom_call.1}
  #allocation0 [shape = 'u32[]', space=smem, size = 0x4, offset = 0x4, fixed_abs, tag = 'smem constant byte address 0x4 - core index']
  #allocation1 [shape = 'u32[144,128]{1,0:T(1,128)}', space=vmem, size = 0x12000, scoped, tag = 'internal scratch']
  %s0 = inlined_call_operand.hbm [shape: f32[1,256], index: 0, kind: input, shape index: {}]
  %s1 = inlined_call_operand.hbm [shape: f32[1,1024,256], index: 1, kind: input, shape index: {}]
  %s2 = inlined_call_operand.vmem [shape: f32[1024,1], index: 2, kind: output, shape index: {}]
  %s3 = sld [smem:[#allocation0]]
  $region49: #{tpu_custom_call.1} parent=0
    _
  %s5 = ssub.s32 1, %s3
  %s6 = scalar_select 0, %s5, %s3
  $region1: #{tpu_custom_call.1} parent=0
    #allocation2 [shape = 'u8[1024]{0}', space=vmem, size = 0x400, scoped, tag = 'input window, operand 0, single buffered']
    #allocation3 [shape = 's32[2]{0}', space=sflag, size = 0x8, scoped, tag = 'scoped memory for tpu_custom_call.1']
    #allocation4 [shape = 'u8[1048576]{0}', space=vmem, size = 0x100000, scoped, tag = 'input window, operand 1']
    #allocation5 [shape = 's32[2]{0}', space=sflag, size = 0x8, scoped, tag = 'scoped memory for tpu_custom_call.1']
    %7 = vsyncpa [#allocation3], 0
    %8 = vsyncpa [#allocation5], 0
    %s9 = scalar_lea.sflag [#allocation5], 1
    %10 = vsyncpa %s9, 0
    loop: start=0, step=1, limit=4
    $region2: #{tpu_custom_call.1} parent=1 // loop_pre_header
      _
    $region3: #{tpu_custom_call.1} parent=1 // loop_header
      %s12 = sphi 0, %s16
      %p13 = scmp.ge.s32.totalorder %s12, 4
      %s20 = sphi 0, %s20
      %s22 = sphi 0, %s20
      %s23 = sphi 0, %s22
      %s37 = sphi 0, %s23
      %s43 = sphi 0, %s45
      %s46 = sphi 0, %s43
      %s47 = sphi 0, %s46
      %s63 = sphi 0, %s47
      %s69 = sphi 0, %s71
      %s72 = sphi 0, %s69
      %s73 = sphi 0, %s72
      %s89 = sphi 0, %s73
    $region4: #{tpu_custom_call.1} parent=1 // loop_header_branch
      %15 = sbr.rel (%p13) target = $region8
    $region5: #{tpu_custom_call.1} parent=1 // loop_body
      %s17 = ssub.s32 %s12, 1
      %s18 = ssub.s32 %s12, 2
      %s19 = sadd.s32 %s12, 1
      %s21 = sadd.s32 %s20, 1
      %p24 = scmp.eq.s32.totalorder %s12, 1
      %p25 = scmp.ne.s32.totalorder %s20, %s22
      %p26 = scmp.eq.s32.totalorder %s12, 0
      %p27 = por %p25, %p26
      %p28 = scmp.ne.s32.totalorder %s20, %s22
      %p29 = scmp.eq.s32.totalorder %s17, 1
      %p30 = por %p28, %p29
      %p31 = scmp.ne.s32.totalorder %s22, %s23
      %p32 = scmp.eq.s32.totalorder %s17, 0
      %p33 = por %p31, %p32
      %p34 = scmp.ne.s32.totalorder %s22, %s23
      %p35 = scmp.eq.s32.totalorder %s18, 1
      %p36 = por %p34, %p35
      %p38 = scmp.ne.s32.totalorder %s23, %s37
      %p39 = scmp.eq.s32.totalorder %s18, 0
      %p40 = por %p38, %p39
      %s41 = ssub.s32 %s12, %s19
      %p42 = scmp.eq.s32.totalorder %s41, 0
      %s44 = sadd.s32 %s43, 1
      %s45 = scalar_select %p42, %s43, %s44
      %p48 = pneg %p42
      %p49 = scmp.eq.s32.totalorder %s12, 1
      %p50 = por %p48, %p49
      %p51 = scmp.ne.s32.totalorder %s43, %s46
      %p52 = scmp.eq.s32.totalorder %s12, 0
      %p53 = por %p51, %p52
      %p54 = scmp.ne.s32.totalorder %s43, %s46
      %p55 = scmp.eq.s32.totalorder %s17, 1
      %p56 = por %p54, %p55
      %p57 = scmp.ne.s32.totalorder %s46, %s47
      %p58 = scmp.eq.s32.totalorder %s17, 0
      %p59 = por %p57, %p58
      %p60 = scmp.ne.s32.totalorder %s46, %s47
      %p61 = scmp.eq.s32.totalorder %s18, 1
      %p62 = por %p60, %p61
      %p64 = scmp.ne.s32.totalorder %s47, %s63
      %p65 = scmp.eq.s32.totalorder %s18, 0
      %p66 = por %p64, %p65
      %s67 = ssub.s32 %s12, %s19
      %p68 = scmp.eq.s32.totalorder %s67, 0
      %s70 = sadd.s32 %s69, 1
      %s71 = scalar_select %p68, %s69, %s70
      %p74 = pneg %p68
      %p75 = scmp.eq.s32.totalorder %s12, 1
      %p76 = por %p74, %p75
      %p77 = scmp.ne.s32.totalorder %s69, %s72
      %p78 = scmp.eq.s32.totalorder %s12, 0
      %p79 = por %p77, %p78
      %p80 = scmp.ne.s32.totalorder %s69, %s72
      %p81 = scmp.eq.s32.totalorder %s17, 1
      %p82 = por %p80, %p81
      %p83 = scmp.ne.s32.totalorder %s72, %s73
      %p84 = scmp.eq.s32.totalorder %s17, 0
      %p85 = por %p83, %p84
      %p86 = scmp.ne.s32.totalorder %s72, %s73
      %p87 = scmp.eq.s32.totalorder %s18, 1
      %p88 = por %p86, %p87
      %p90 = scmp.ne.s32.totalorder %s73, %s89
      %p91 = scmp.eq.s32.totalorder %s18, 0
      %p92 = por %p90, %p91
      %p93 = scmp.le.s32.totalorder 1, %s12
      %p94 = scmp.lt.s32.totalorder %s12, 3
      %p95 = pnand %p93, %p94
      %p96 = pneg %p95
      // Predicated region
      $region9: #{tpu_custom_call.1} parent=5 // pred_check
        _
      $region10: #{tpu_custom_call.1} parent=5 // pred_check_branch
        %98 = sbr.rel (%p95) target = $region12
      $region11: #{tpu_custom_call.1} parent=5 // pred_region
        %s99 = ssub.s32 %s12, 1
        // Predicated region
        $region13: #{tpu_custom_call.1} parent=11 // pred_check
          %p100 = pneg %p33
        $region14: #{tpu_custom_call.1} parent=11 // pred_check_branch
          %102 = sbr.rel (%p100) target = $region16
        $region15: #{tpu_custom_call.1} parent=11 // pred_region
          %s104 = ssub.s32 32, 32
          %105 = vsyncadd [#allocation3], %s104
          %s107 = sshll.u32 [#allocation2], 4
          %s108 = int_to_ptr.vmem [resolvable:$true] %s107
          %110 = dma.hbm_to_vmem [thread:$0]  %s0, 32, %s108, [#allocation3]
        $region16: #{tpu_custom_call.1} parent=11 // pred_fallthru
          _
      $region12: #{tpu_custom_call.1} parent=5 // pred_fallthru
        _
      %p111 = scmp.lt.s32.totalorder %s12, 2
      // Predicated region
      $region17: #{tpu_custom_call.1} parent=5 // pred_check
        %p112 = pneg %p111
      $region18: #{tpu_custom_call.1} parent=5 // pred_check_branch
        %114 = sbr.rel (%p112) target = $region20
      $region19: #{tpu_custom_call.1} parent=5 // pred_region
        // Predicated region
        $region21: #{tpu_custom_call.1} parent=19 // pred_check
          %p115 = pneg %p53
        $region22: #{tpu_custom_call.1} parent=19 // pred_check_branch
          %117 = sbr.rel (%p115) target = $region24
        $region23: #{tpu_custom_call.1} parent=19 // pred_region
          %s118 = sand.u32 %s43, 1
          %s119 = scalar_lea.sflag [#allocation5], %s118
          %s120 = sand.u32 %s43, 1
          %s121 = smul.addr %s120, 1024
          %s122 = scalar_lea.vmem [#allocation4], %s121
          %s123 = smul.u32 64, %s12
          %s125 = ssub.s32 16384, 16384
          %126 = vsyncadd %s119, %s125
          %s127 = smul.addr %s123, 2
          %s128 = smul.addr %s127, 128
          %s129 = scalar_lea.hbm %s1, %s128
          %s130 = sshll.u32 %s122, 4
          %s131 = int_to_ptr.vmem [resolvable:$true] %s130
          %136 = dma.hbm_to_vmem [thread:$0]  %s129, 16384, %s131, %s119, 256, 256, 16
        $region24: #{tpu_custom_call.1} parent=19 // pred_fallthru
          _
      $region20: #{tpu_custom_call.1} parent=5 // pred_fallthru
        _
      %p137 = scmp.le.s32.totalorder 1, %s12
      %p138 = scmp.lt.s32.totalorder %s12, 3
      %p139 = pnand %p137, %p138
      %p140 = pneg %p139
      // Predicated region
      $region25: #{tpu_custom_call.1} parent=5 // pred_check
        _
      $region26: #{tpu_custom_call.1} parent=5 // pred_check_branch
        %142 = sbr.rel (%p139) target = $region28
      $region27: #{tpu_custom_call.1} parent=5 // pred_region
        %s143 = ssub.s32 %s12, 1
        // Predicated region
        $region29: #{tpu_custom_call.1} parent=27 // pred_check
          %p144 = pneg %p33
        $region30: #{tpu_custom_call.1} parent=27 // pred_check_branch
          %146 = sbr.rel (%p144) target = $region32
        $region31: #{tpu_custom_call.1} parent=27 // pred_region
          %147 = dma.done [#allocation3], 32
        $region32: #{tpu_custom_call.1} parent=27 // pred_fallthru
          _
        %s148 = sand.u32 %s46, 1
        %s149 = scalar_lea.sflag [#allocation5], %s148
        %s150 = sand.u32 %s46, 1
        %s151 = smul.addr %s150, 1024
        %s152 = scalar_lea.vmem [#allocation4], %s151
        // Predicated region
        $region33: #{tpu_custom_call.1} parent=27 // pred_check
          %p153 = pneg %p59
        $region34: #{tpu_custom_call.1} parent=27 // pred_check_branch
          %155 = sbr.rel (%p153) target = $region36
        $region35: #{tpu_custom_call.1} parent=27 // pred_region
          %156 = dma.done %s149, 16384
        $region36: #{tpu_custom_call.1} parent=27 // pred_fallthru
          _
        %p157 = pneg %p33
        %p158 = pneg %p30
        %s159 = sand.u32 %s46, 1
        %s160 = scalar_lea.sflag [#allocation5], %s159
        %s161 = sand.u32 %s46, 1
        %s162 = smul.addr %s161, 1024
        %s163 = scalar_lea.vmem [#allocation4], %s162
        %p164 = pneg %p59
        %p165 = pneg %p56
        %p166 = pneg %p85
        %p167 = pneg %p82
        %s168 = smul.u32 64, %s17
        %p169 = scmp.lt.s32.totalorder %s168, 127
        %s170 = scalar_select %p169, %s168, 127
        %s171 = smul.addr %s170, 8
        %s172 = scalar_lea.vmem %s2, %s171
        %s173 = smul.u32 64, %s17
        %s174 = smul.u32 64, %s17
        %p175 = scmp.lt.s32.totalorder %s174, 127
        %s176 = scalar_select %p175, %s174, 127
        %s177 = smul.addr %s176, 8
        %s178 = scalar_lea.vmem %s2, %s177
        %s179 = smul.u32 64, %s17
        %v180 = vld [vmem:[%s152] sm:$0xff]
        %v181 = vld [vmem:[%s152 + $0x8] sm:$0xff]
        %v182 = vld [vmem:[%s152 + $0x10] sm:$0xff]
        %v183 = vld [vmem:[%s152 + $0x18] sm:$0xff]
        %v184 = vld [vmem:[%s152 + $0x20] sm:$0xff]
        %v185 = vld [vmem:[%s152 + $0x28] sm:$0xff]
        %v186 = vld [vmem:[%s152 + $0x30] sm:$0xff]
        %v187 = vld [vmem:[%s152 + $0x38] sm:$0xff]
        %v188 = vld [vmem:[%s152 + $0x40] sm:$0xff]
        %v189 = vld [vmem:[%s152 + $0x48] sm:$0xff]
        %v190 = vld [vmem:[%s152 + $0x50] sm:$0xff]
        %v191 = vld [vmem:[%s152 + $0x58] sm:$0xff]
        %v192 = vld [vmem:[%s152 + $0x60] sm:$0xff]
        %v193 = vld [vmem:[%s152 + $0x68] sm:$0xff]
        %v194 = vld [vmem:[%s152 + $0x70] sm:$0xff]
        %v195 = vld [vmem:[%s152 + $0x78] sm:$0xff]
        %v196 = vld [vmem:[%s152 + $0x80] sm:$0xff]
        %v197 = vld [vmem:[%s152 + $0x88] sm:$0xff]
        %v198 = vld [vmem:[%s152 + $0x90] sm:$0xff]
        %v199 = vld [vmem:[%s152 + $0x98] sm:$0xff]
        %v200 = vld [vmem:[%s152 + $0xa0] sm:$0xff]
        %v201 = vld [vmem:[%s152 + $0xa8] sm:$0xff]
        %v202 = vld [vmem:[%s152 + $0xb0] sm:$0xff]
        %v203 = vld [vmem:[%s152 + $0xb8] sm:$0xff]
        %v204 = vld [vmem:[%s152 + $0xc0] sm:$0xff]
        %v205 = vld [vmem:[%s152 + $0xc8] sm:$0xff]
        %v206 = vld [vmem:[%s152 + $0xd0] sm:$0xff]
        %v207 = vld [vmem:[%s152 + $0xd8] sm:$0xff]
        %v208 = vld [vmem:[%s152 + $0xe0] sm:$0xff]
        %v209 = vld [vmem:[%s152 + $0xe8] sm:$0xff]
        %v210 = vld [vmem:[%s152 + $0xf0] sm:$0xff]
        %v211 = vld [vmem:[%s152 + $0xf8] sm:$0xff]
        %v212 = vld [vmem:[%s152 + $0x100] sm:$0xff]
        %v213 = vld [vmem:[%s152 + $0x108] sm:$0xff]
        %v214 = vld [vmem:[%s152 + $0x110] sm:$0xff]
        %v215 = vld [vmem:[%s152 + $0x118] sm:$0xff]
        %v216 = vld [vmem:[%s152 + $0x120] sm:$0xff]
        %v217 = vld [vmem:[%s152 + $0x128] sm:$0xff]
        %v218 = vld [vmem:[%s152 + $0x130] sm:$0xff]
        %v219 = vld [vmem:[%s152 + $0x138] sm:$0xff]
        %v220 = vld [vmem:[%s152 + $0x140] sm:$0xff]
        %v221 = vld [vmem:[%s152 + $0x148] sm:$0xff]
        %v222 = vld [vmem:[%s152 + $0x150] sm:$0xff]
        %v223 = vld [vmem:[%s152 + $0x158] sm:$0xff]
        %v224 = vld [vmem:[%s152 + $0x160] sm:$0xff]
        %v225 = vld [vmem:[%s152 + $0x168] sm:$0xff]
        %v226 = vld [vmem:[%s152 + $0x170] sm:$0xff]
        %v227 = vld [vmem:[%s152 + $0x178] sm:$0xff]
        %v228 = vld [vmem:[%s152 + $0x180] sm:$0xff]
        %v229 = vld [vmem:[%s152 + $0x188] sm:$0xff]
        %v230 = vld [vmem:[%s152 + $0x190] sm:$0xff]
        %v231 = vld [vmem:[%s152 + $0x198] sm:$0xff]
        %v232 = vld [vmem:[%s152 + $0x1a0] sm:$0xff]
        %v233 = vld [vmem:[%s152 + $0x1a8] sm:$0xff]
        %v234 = vld [vmem:[%s152 + $0x1b0] sm:$0xff]
        %v235 = vld [vmem:[%s152 + $0x1b8] sm:$0xff]
        %v236 = vld [vmem:[%s152 + $0x1c0] sm:$0xff]
        %v237 = vld [vmem:[%s152 + $0x1c8] sm:$0xff]
        %v238 = vld [vmem:[%s152 + $0x1d0] sm:$0xff]
        %v239 = vld [vmem:[%s152 + $0x1d8] sm:$0xff]
        %v240 = vld [vmem:[%s152 + $0x1e0] sm:$0xff]
        %v241 = vld [vmem:[%s152 + $0x1e8] sm:$0xff]
        %v242 = vld [vmem:[%s152 + $0x1f0] sm:$0xff]
        %v243 = vld [vmem:[%s152 + $0x1f8] sm:$0xff]
        %v244 = vld [vmem:[%s152 + $0x200] sm:$0xff]
        %v245 = vld [vmem:[%s152 + $0x208] sm:$0xff]
        %v246 = vld [vmem:[%s152 + $0x210] sm:$0xff]
        %v247 = vld [vmem:[%s152 + $0x218] sm:$0xff]
        %v248 = vld [vmem:[%s152 + $0x220] sm:$0xff]
        %v249 = vld [vmem:[%s152 + $0x228] sm:$0xff]
        %v250 = vld [vmem:[%s152 + $0x230] sm:$0xff]
        %v251 = vld [vmem:[%s152 + $0x238] sm:$0xff]
        %v252 = vld [vmem:[%s152 + $0x240] sm:$0xff]
        %v253 = vld [vmem:[%s152 + $0x248] sm:$0xff]
        %v254 = vld [vmem:[%s152 + $0x250] sm:$0xff]
        %v255 = vld [vmem:[%s152 + $0x258] sm:$0xff]
        %v256 = vld [vmem:[%s152 + $0x260] sm:$0xff]
        %v257 = vld [vmem:[%s152 + $0x268] sm:$0xff]
        %v258 = vld [vmem:[%s152 + $0x270] sm:$0xff]
        %v259 = vld [vmem:[%s152 + $0x278] sm:$0xff]
        %v260 = vld [vmem:[%s152 + $0x280] sm:$0xff]
        %v261 = vld [vmem:[%s152 + $0x288] sm:$0xff]
        %v262 = vld [vmem:[%s152 + $0x290] sm:$0xff]
        %v263 = vld [vmem:[%s152 + $0x298] sm:$0xff]
        %v264 = vld [vmem:[%s152 + $0x2a0] sm:$0xff]
        %v265 = vld [vmem:[%s152 + $0x2a8] sm:$0xff]
        %v266 = vld [vmem:[%s152 + $0x2b0] sm:$0xff]
        %v267 = vld [vmem:[%s152 + $0x2b8] sm:$0xff]
        %v268 = vld [vmem:[%s152 + $0x2c0] sm:$0xff]
        %v269 = vld [vmem:[%s152 + $0x2c8] sm:$0xff]
        %v270 = vld [vmem:[%s152 + $0x2d0] sm:$0xff]
        %v271 = vld [vmem:[%s152 + $0x2d8] sm:$0xff]
        %v272 = vld [vmem:[%s152 + $0x2e0] sm:$0xff]
        %v273 = vld [vmem:[%s152 + $0x2e8] sm:$0xff]
        %v274 = vld [vmem:[%s152 + $0x2f0] sm:$0xff]
        %v275 = vld [vmem:[%s152 + $0x2f8] sm:$0xff]
        %v276 = vld [vmem:[%s152 + $0x300] sm:$0xff]
        %v277 = vld [vmem:[%s152 + $0x308] sm:$0xff]
        %v278 = vld [vmem:[%s152 + $0x310] sm:$0xff]
        %v279 = vld [vmem:[%s152 + $0x318] sm:$0xff]
        %v280 = vld [vmem:[%s152 + $0x320] sm:$0xff]
        %v281 = vld [vmem:[%s152 + $0x328] sm:$0xff]
        %v282 = vld [vmem:[%s152 + $0x330] sm:$0xff]
        %v283 = vld [vmem:[%s152 + $0x338] sm:$0xff]
        %v284 = vld [vmem:[%s152 + $0x340] sm:$0xff]
        %v285 = vld [vmem:[%s152 + $0x348] sm:$0xff]
        %v286 = vld [vmem:[%s152 + $0x350] sm:$0xff]
        %v287 = vld [vmem:[%s152 + $0x358] sm:$0xff]
        %v288 = vld [vmem:[%s152 + $0x360] sm:$0xff]
        %v289 = vld [vmem:[%s152 + $0x368] sm:$0xff]
        %v290 = vld [vmem:[%s152 + $0x370] sm:$0xff]
        %v291 = vld [vmem:[%s152 + $0x378] sm:$0xff]
        %v292 = vld [vmem:[%s152 + $0x380] sm:$0xff]
        %v293 = vld [vmem:[%s152 + $0x388] sm:$0xff]
        %v294 = vld [vmem:[%s152 + $0x390] sm:$0xff]
        %v295 = vld [vmem:[%s152 + $0x398] sm:$0xff]
        %v296 = vld [vmem:[%s152 + $0x3a0] sm:$0xff]
        %v297 = vld [vmem:[%s152 + $0x3a8] sm:$0xff]
        %v298 = vld [vmem:[%s152 + $0x3b0] sm:$0xff]
        %v299 = vld [vmem:[%s152 + $0x3b8] sm:$0xff]
        %v300 = vld [vmem:[%s152 + $0x3c0] sm:$0xff]
        %v301 = vld [vmem:[%s152 + $0x3c8] sm:$0xff]
        %v302 = vld [vmem:[%s152 + $0x3d0] sm:$0xff]
        %v303 = vld [vmem:[%s152 + $0x3d8] sm:$0xff]
        %v304 = vld [vmem:[%s152 + $0x3e0] sm:$0xff]
        %v305 = vld [vmem:[%s152 + $0x3e8] sm:$0xff]
        %v306 = vld [vmem:[%s152 + $0x3f0] sm:$0xff]
        %v307 = vld [vmem:[%s152 + $0x3f8] sm:$0xff]
        %v308 = vld [vmem:[#allocation2] sm:$0x3]
        %v310 = vlaneseq
        %v311 = vshrl.u32 %v310, 7
        %v312 = vsub.s32 0, %v311
        %v313 = vrot.slane %v308, %v312
        %v314 = vlaneseq
        %v315 = vshrl.u32 %v314, 7
        %v316 = vsub.s32 1, %v315
        %v317 = vrot.slane %v308, %v316
        %v320 = vmul.f32 %v180, %v313
        %v321 = vmul.f32 %v181, %v317
        %v322 = vmul.f32 %v182, %v313
        %v323 = vmul.f32 %v183, %v317
        %v324 = vmul.f32 %v184, %v313
        %v325 = vmul.f32 %v185, %v317
        %v326 = vmul.f32 %v186, %v313
        %v327 = vmul.f32 %v187, %v317
        %v328 = vmul.f32 %v188, %v313
        %v329 = vmul.f32 %v189, %v317
        %v330 = vmul.f32 %v190, %v313
        %v331 = vmul.f32 %v191, %v317
        %v332 = vmul.f32 %v192, %v313
        %v333 = vmul.f32 %v193, %v317
        %v334 = vmul.f32 %v194, %v313
        %v335 = vmul.f32 %v195, %v317
        %v336 = vmul.f32 %v196, %v313
        %v337 = vmul.f32 %v197, %v317
        %v338 = vmul.f32 %v198, %v313
        %v339 = vmul.f32 %v199, %v317
        %v340 = vmul.f32 %v200, %v313
        %v341 = vmul.f32 %v201, %v317
        %v342 = vmul.f32 %v202, %v313
        %v343 = vmul.f32 %v203, %v317
        %v344 = vmul.f32 %v204, %v313
        %v345 = vmul.f32 %v205, %v317
        %v346 = vmul.f32 %v206, %v313
        %v347 = vmul.f32 %v207, %v317
        %v348 = vmul.f32 %v208, %v313
        %v349 = vmul.f32 %v209, %v317
        %v350 = vmul.f32 %v210, %v313
        %v351 = vmul.f32 %v211, %v317
        %v352 = vmul.f32 %v212, %v313
        %v353 = vmul.f32 %v213, %v317
        %v354 = vmul.f32 %v214, %v313
        %v355 = vmul.f32 %v215, %v317
        %v356 = vmul.f32 %v216, %v313
        %v357 = vmul.f32 %v217, %v317
        %v358 = vmul.f32 %v218, %v313
        %v359 = vmul.f32 %v219, %v317
        %v360 = vmul.f32 %v220, %v313
        %v361 = vmul.f32 %v221, %v317
        %v362 = vmul.f32 %v222, %v313
        %v363 = vmul.f32 %v223, %v317
        %v364 = vmul.f32 %v224, %v313
        %v365 = vmul.f32 %v225, %v317
        %v366 = vmul.f32 %v226, %v313
        %v367 = vmul.f32 %v227, %v317
        %v368 = vmul.f32 %v228, %v313
        %v369 = vmul.f32 %v229, %v317
        %v370 = vmul.f32 %v230, %v313
        %v371 = vmul.f32 %v231, %v317
        %v372 = vmul.f32 %v232, %v313
        %v373 = vmul.f32 %v233, %v317
        %v374 = vmul.f32 %v234, %v313
        %v375 = vmul.f32 %v235, %v317
        %v376 = vmul.f32 %v236, %v313
        %v377 = vmul.f32 %v237, %v317
        %v378 = vmul.f32 %v238, %v313
        %v379 = vmul.f32 %v239, %v317
        %v380 = vmul.f32 %v240, %v313
        %v381 = vmul.f32 %v241, %v317
        %v382 = vmul.f32 %v242, %v313
        %v383 = vmul.f32 %v243, %v317
        %v384 = vmul.f32 %v244, %v313
        %v385 = vmul.f32 %v245, %v317
        %v386 = vmul.f32 %v246, %v313
        %v387 = vmul.f32 %v247, %v317
        %v388 = vmul.f32 %v248, %v313
        %v389 = vmul.f32 %v249, %v317
        %v390 = vmul.f32 %v250, %v313
        %v391 = vmul.f32 %v251, %v317
        %v392 = vmul.f32 %v252, %v313
        %v393 = vmul.f32 %v253, %v317
        %v394 = vmul.f32 %v254, %v313
        %v395 = vmul.f32 %v255, %v317
        %v396 = vmul.f32 %v256, %v313
        %v397 = vmul.f32 %v257, %v317
        %v398 = vmul.f32 %v258, %v313
        %v399 = vmul.f32 %v259, %v317
        %v400 = vmul.f32 %v260, %v313
        %v401 = vmul.f32 %v261, %v317
        %v402 = vmul.f32 %v262, %v313
        %v403 = vmul.f32 %v263, %v317
        %v404 = vmul.f32 %v264, %v313
        %v405 = vmul.f32 %v265, %v317
        %v406 = vmul.f32 %v266, %v313
        %v407 = vmul.f32 %v267, %v317
        %v408 = vmul.f32 %v268, %v313
        %v409 = vmul.f32 %v269, %v317
        %v410 = vmul.f32 %v270, %v313
        %v411 = vmul.f32 %v271, %v317
        %v412 = vmul.f32 %v272, %v313
        %v413 = vmul.f32 %v273, %v317
        %v414 = vmul.f32 %v274, %v313
        %v415 = vmul.f32 %v275, %v317
        %v416 = vmul.f32 %v276, %v313
        %v417 = vmul.f32 %v277, %v317
        %v418 = vmul.f32 %v278, %v313
        %v419 = vmul.f32 %v279, %v317
        %v420 = vmul.f32 %v280, %v313
        %v421 = vmul.f32 %v281, %v317
        %v422 = vmul.f32 %v282, %v313
        %v423 = vmul.f32 %v283, %v317
        %v424 = vmul.f32 %v284, %v313
        %v425 = vmul.f32 %v285, %v317
        %v426 = vmul.f32 %v286, %v313
        %v427 = vmul.f32 %v287, %v317
        %v428 = vmul.f32 %v288, %v313
        %v429 = vmul.f32 %v289, %v317
        %v430 = vmul.f32 %v290, %v313
        %v431 = vmul.f32 %v291, %v317
        %v432 = vmul.f32 %v292, %v313
        %v433 = vmul.f32 %v293, %v317
        %v434 = vmul.f32 %v294, %v313
        %v435 = vmul.f32 %v295, %v317
        %v436 = vmul.f32 %v296, %v313
        %v437 = vmul.f32 %v297, %v317
        %v438 = vmul.f32 %v298, %v313
        %v439 = vmul.f32 %v299, %v317
        %v440 = vmul.f32 %v300, %v313
        %v441 = vmul.f32 %v301, %v317
        %v442 = vmul.f32 %v302, %v313
        %v443 = vmul.f32 %v303, %v317
        %v444 = vmul.f32 %v304, %v313
        %v445 = vmul.f32 %v305, %v317
        %v446 = vmul.f32 %v306, %v313
        %v447 = vmul.f32 %v307, %v317
        %v448 = vadd.f32 %v320, %v321
        %449 = vadd.xlane.f32.xlu0 %v448
        %v450 = vpop.xlane.xlu0 %449
        %v451 = vadd.f32 %v322, %v323
        %452 = vadd.xlane.f32.xlu0 %v451
        %v453 = vpop.xlane.xlu0 %452
        %v454 = vadd.f32 %v324, %v325
        %455 = vadd.xlane.f32.xlu0 %v454
        %v456 = vpop.xlane.xlu0 %455
        %v457 = vadd.f32 %v326, %v327
        %458 = vadd.xlane.f32.xlu0 %v457
        %v459 = vpop.xlane.xlu0 %458
        %v460 = vadd.f32 %v328, %v329
        %461 = vadd.xlane.f32.xlu0 %v460
        %v462 = vpop.xlane.xlu0 %461
        %v463 = vadd.f32 %v330, %v331
        %464 = vadd.xlane.f32.xlu0 %v463
        %v465 = vpop.xlane.xlu0 %464
        %v466 = vadd.f32 %v332, %v333
        %467 = vadd.xlane.f32.xlu0 %v466
        %v468 = vpop.xlane.xlu0 %467
        %v469 = vadd.f32 %v334, %v335
        %470 = vadd.xlane.f32.xlu0 %v469
        %v471 = vpop.xlane.xlu0 %470
        %v472 = vadd.f32 %v336, %v337
        %473 = vadd.xlane.f32.xlu0 %v472
        %v474 = vpop.xlane.xlu0 %473
        %v475 = vadd.f32 %v338, %v339
        %476 = vadd.xlane.f32.xlu0 %v475
        %v477 = vpop.xlane.xlu0 %476
        %v478 = vadd.f32 %v340, %v341
        %479 = vadd.xlane.f32.xlu0 %v478
        %v480 = vpop.xlane.xlu0 %479
        %v481 = vadd.f32 %v342, %v343
        %482 = vadd.xlane.f32.xlu0 %v481
        %v483 = vpop.xlane.xlu0 %482
        %v484 = vadd.f32 %v344, %v345
        %485 = vadd.xlane.f32.xlu0 %v484
        %v486 = vpop.xlane.xlu0 %485
        %v487 = vadd.f32 %v346, %v347
        %488 = vadd.xlane.f32.xlu0 %v487
        %v489 = vpop.xlane.xlu0 %488
        %v490 = vadd.f32 %v348, %v349
        %491 = vadd.xlane.f32.xlu0 %v490
        %v492 = vpop.xlane.xlu0 %491
        %v493 = vadd.f32 %v350, %v351
        %494 = vadd.xlane.f32.xlu0 %v493
        %v495 = vpop.xlane.xlu0 %494
        %v496 = vadd.f32 %v352, %v353
        %497 = vadd.xlane.f32.xlu0 %v496
        %v498 = vpop.xlane.xlu0 %497
        %v499 = vadd.f32 %v354, %v355
        %500 = vadd.xlane.f32.xlu0 %v499
        %v501 = vpop.xlane.xlu0 %500
        %v502 = vadd.f32 %v356, %v357
        %503 = vadd.xlane.f32.xlu0 %v502
        %v504 = vpop.xlane.xlu0 %503
        %v505 = vadd.f32 %v358, %v359
        %506 = vadd.xlane.f32.xlu0 %v505
        %v507 = vpop.xlane.xlu0 %506
        %v508 = vadd.f32 %v360, %v361
        %509 = vadd.xlane.f32.xlu0 %v508
        %v510 = vpop.xlane.xlu0 %509
        %v511 = vadd.f32 %v362, %v363
        %512 = vadd.xlane.f32.xlu0 %v511
        %v513 = vpop.xlane.xlu0 %512
        %v514 = vadd.f32 %v364, %v365
        %515 = vadd.xlane.f32.xlu0 %v514
        %v516 = vpop.xlane.xlu0 %515
        %v517 = vadd.f32 %v366, %v367
        %518 = vadd.xlane.f32.xlu0 %v517
        %v519 = vpop.xlane.xlu0 %518
        %v520 = vadd.f32 %v368, %v369
        %521 = vadd.xlane.f32.xlu0 %v520
        %v522 = vpop.xlane.xlu0 %521
        %v523 = vadd.f32 %v370, %v371
        %524 = vadd.xlane.f32.xlu0 %v523
        %v525 = vpop.xlane.xlu0 %524
        %v526 = vadd.f32 %v372, %v373
        %527 = vadd.xlane.f32.xlu0 %v526
        %v528 = vpop.xlane.xlu0 %527
        %v529 = vadd.f32 %v374, %v375
        %530 = vadd.xlane.f32.xlu0 %v529
        %v531 = vpop.xlane.xlu0 %530
        %v532 = vadd.f32 %v376, %v377
        %533 = vadd.xlane.f32.xlu0 %v532
        %v534 = vpop.xlane.xlu0 %533
        %v535 = vadd.f32 %v378, %v379
        %536 = vadd.xlane.f32.xlu0 %v535
        %v537 = vpop.xlane.xlu0 %536
        %v538 = vadd.f32 %v380, %v381
        %539 = vadd.xlane.f32.xlu0 %v538
        %v540 = vpop.xlane.xlu0 %539
        %v541 = vadd.f32 %v382, %v383
        %542 = vadd.xlane.f32.xlu0 %v541
        %v543 = vpop.xlane.xlu0 %542
        %v544 = vadd.f32 %v384, %v385
        %545 = vadd.xlane.f32.xlu0 %v544
        %v546 = vpop.xlane.xlu0 %545
        %v547 = vadd.f32 %v386, %v387
        %548 = vadd.xlane.f32.xlu0 %v547
        %v549 = vpop.xlane.xlu0 %548
        %v550 = vadd.f32 %v388, %v389
        %551 = vadd.xlane.f32.xlu0 %v550
        %v552 = vpop.xlane.xlu0 %551
        %v553 = vadd.f32 %v390, %v391
        %554 = vadd.xlane.f32.xlu0 %v553
        %v555 = vpop.xlane.xlu0 %554
        %v556 = vadd.f32 %v392, %v393
        %557 = vadd.xlane.f32.xlu0 %v556
        %v558 = vpop.xlane.xlu0 %557
        %v559 = vadd.f32 %v394, %v395
        %560 = vadd.xlane.f32.xlu0 %v559
        %v561 = vpop.xlane.xlu0 %560
        %v562 = vadd.f32 %v396, %v397
        %563 = vadd.xlane.f32.xlu0 %v562
        %v564 = vpop.xlane.xlu0 %563
        %v565 = vadd.f32 %v398, %v399
        %566 = vadd.xlane.f32.xlu0 %v565
        %v567 = vpop.xlane.xlu0 %566
        %v568 = vadd.f32 %v400, %v401
        %569 = vadd.xlane.f32.xlu0 %v568
        %v570 = vpop.xlane.xlu0 %569
        %v571 = vadd.f32 %v402, %v403
        %572 = vadd.xlane.f32.xlu0 %v571
        %v573 = vpop.xlane.xlu0 %572
        %v574 = vadd.f32 %v404, %v405
        %575 = vadd.xlane.f32.xlu0 %v574
        %v576 = vpop.xlane.xlu0 %575
        %v577 = vadd.f32 %v406, %v407
        %578 = vadd.xlane.f32.xlu0 %v577
        %v579 = vpop.xlane.xlu0 %578
        %v580 = vadd.f32 %v408, %v409
        %581 = vadd.xlane.f32.xlu0 %v580
        %v582 = vpop.xlane.xlu0 %581
        %v583 = vadd.f32 %v410, %v411
        %584 = vadd.xlane.f32.xlu0 %v583
        %v585 = vpop.xlane.xlu0 %584
        %v586 = vadd.f32 %v412, %v413
        %587 = vadd.xlane.f32.xlu0 %v586
        %v588 = vpop.xlane.xlu0 %587
        %v589 = vadd.f32 %v414, %v415
        %590 = vadd.xlane.f32.xlu0 %v589
        %v591 = vpop.xlane.xlu0 %590
        %v592 = vadd.f32 %v416, %v417
        %593 = vadd.xlane.f32.xlu0 %v592
        %v594 = vpop.xlane.xlu0 %593
        %v595 = vadd.f32 %v418, %v419
        %596 = vadd.xlane.f32.xlu0 %v595
        %v597 = vpop.xlane.xlu0 %596
        %v598 = vadd.f32 %v420, %v421
        %599 = vadd.xlane.f32.xlu0 %v598
        %v600 = vpop.xlane.xlu0 %599
        %v601 = vadd.f32 %v422, %v423
        %602 = vadd.xlane.f32.xlu0 %v601
        %v603 = vpop.xlane.xlu0 %602
        %v604 = vadd.f32 %v424, %v425
        %605 = vadd.xlane.f32.xlu0 %v604
        %v606 = vpop.xlane.xlu0 %605
        %v607 = vadd.f32 %v426, %v427
        %608 = vadd.xlane.f32.xlu0 %v607
        %v609 = vpop.xlane.xlu0 %608
        %v610 = vadd.f32 %v428, %v429
        %611 = vadd.xlane.f32.xlu0 %v610
        %v612 = vpop.xlane.xlu0 %611
        %v613 = vadd.f32 %v430, %v431
        %614 = vadd.xlane.f32.xlu0 %v613
        %v615 = vpop.xlane.xlu0 %614
        %v616 = vadd.f32 %v432, %v433
        %617 = vadd.xlane.f32.xlu0 %v616
        %v618 = vpop.xlane.xlu0 %617
        %v619 = vadd.f32 %v434, %v435
        %620 = vadd.xlane.f32.xlu0 %v619
        %v621 = vpop.xlane.xlu0 %620
        %v622 = vadd.f32 %v436, %v437
        %623 = vadd.xlane.f32.xlu0 %v622
        %v624 = vpop.xlane.xlu0 %623
        %v625 = vadd.f32 %v438, %v439
        %626 = vadd.xlane.f32.xlu0 %v625
        %v627 = vpop.xlane.xlu0 %626
        %v628 = vadd.f32 %v440, %v441
        %629 = vadd.xlane.f32.xlu0 %v628
        %v630 = vpop.xlane.xlu0 %629
        %v631 = vadd.f32 %v442, %v443
        %632 = vadd.xlane.f32.xlu0 %v631
        %v633 = vpop.xlane.xlu0 %632
        %v634 = vadd.f32 %v444, %v445
        %635 = vadd.xlane.f32.xlu0 %v634
        %v636 = vpop.xlane.xlu0 %635
        %v637 = vadd.f32 %v446, %v447
        %638 = vadd.xlane.f32.xlu0 %v637
        %v639 = vpop.xlane.xlu0 %638
        %vm640 = vcmask 7168
        %641 = vst.msk [vmem:[%s178] sm:$0xff] %vm640, %v450
        %642 = vst.msk [vmem:[%s178 + $0x8] sm:$0xff] %vm640, %v453
        %643 = vst.msk [vmem:[%s178 + $0x10] sm:$0xff] %vm640, %v456
        %644 = vst.msk [vmem:[%s178 + $0x18] sm:$0xff] %vm640, %v459
        %645 = vst.msk [vmem:[%s178 + $0x20] sm:$0xff] %vm640, %v462
        %646 = vst.msk [vmem:[%s178 + $0x28] sm:$0xff] %vm640, %v465
        %647 = vst.msk [vmem:[%s178 + $0x30] sm:$0xff] %vm640, %v468
        %648 = vst.msk [vmem:[%s178 + $0x38] sm:$0xff] %vm640, %v471
        %649 = vst.msk [vmem:[%s178 + $0x40] sm:$0xff] %vm640, %v474
        %650 = vst.msk [vmem:[%s178 + $0x48] sm:$0xff] %vm640, %v477
        %651 = vst.msk [vmem:[%s178 + $0x50] sm:$0xff] %vm640, %v480
        %652 = vst.msk [vmem:[%s178 + $0x58] sm:$0xff] %vm640, %v483
        %653 = vst.msk [vmem:[%s178 + $0x60] sm:$0xff] %vm640, %v486
        %654 = vst.msk [vmem:[%s178 + $0x68] sm:$0xff] %vm640, %v489
        %655 = vst.msk [vmem:[%s178 + $0x70] sm:$0xff] %vm640, %v492
        %656 = vst.msk [vmem:[%s178 + $0x78] sm:$0xff] %vm640, %v495
        %657 = vst.msk [vmem:[%s178 + $0x80] sm:$0xff] %vm640, %v498
        %658 = vst.msk [vmem:[%s178 + $0x88] sm:$0xff] %vm640, %v501
        %659 = vst.msk [vmem:[%s178 + $0x90] sm:$0xff] %vm640, %v504
        %660 = vst.msk [vmem:[%s178 + $0x98] sm:$0xff] %vm640, %v507
        %661 = vst.msk [vmem:[%s178 + $0xa0] sm:$0xff] %vm640, %v510
        %662 = vst.msk [vmem:[%s178 + $0xa8] sm:$0xff] %vm640, %v513
        %663 = vst.msk [vmem:[%s178 + $0xb0] sm:$0xff] %vm640, %v516
        %664 = vst.msk [vmem:[%s178 + $0xb8] sm:$0xff] %vm640, %v519
        %665 = vst.msk [vmem:[%s178 + $0xc0] sm:$0xff] %vm640, %v522
        %666 = vst.msk [vmem:[%s178 + $0xc8] sm:$0xff] %vm640, %v525
        %667 = vst.msk [vmem:[%s178 + $0xd0] sm:$0xff] %vm640, %v528
        %668 = vst.msk [vmem:[%s178 + $0xd8] sm:$0xff] %vm640, %v531
        %669 = vst.msk [vmem:[%s178 + $0xe0] sm:$0xff] %vm640, %v534
        %670 = vst.msk [vmem:[%s178 + $0xe8] sm:$0xff] %vm640, %v537
        %671 = vst.msk [vmem:[%s178 + $0xf0] sm:$0xff] %vm640, %v540
        %672 = vst.msk [vmem:[%s178 + $0xf8] sm:$0xff] %vm640, %v543
        %673 = vst.msk [vmem:[%s178 + $0x100] sm:$0xff] %vm640, %v546
        %674 = vst.msk [vmem:[%s178 + $0x108] sm:$0xff] %vm640, %v549
        %675 = vst.msk [vmem:[%s178 + $0x110] sm:$0xff] %vm640, %v552
        %676 = vst.msk [vmem:[%s178 + $0x118] sm:$0xff] %vm640, %v555
        %677 = vst.msk [vmem:[%s178 + $0x120] sm:$0xff] %vm640, %v558
        %678 = vst.msk [vmem:[%s178 + $0x128] sm:$0xff] %vm640, %v561
        %679 = vst.msk [vmem:[%s178 + $0x130] sm:$0xff] %vm640, %v564
        %680 = vst.msk [vmem:[%s178 + $0x138] sm:$0xff] %vm640, %v567
        %681 = vst.msk [vmem:[%s178 + $0x140] sm:$0xff] %vm640, %v570
        %682 = vst.msk [vmem:[%s178 + $0x148] sm:$0xff] %vm640, %v573
        %683 = vst.msk [vmem:[%s178 + $0x150] sm:$0xff] %vm640, %v576
        %684 = vst.msk [vmem:[%s178 + $0x158] sm:$0xff] %vm640, %v579
        %685 = vst.msk [vmem:[%s178 + $0x160] sm:$0xff] %vm640, %v582
        %686 = vst.msk [vmem:[%s178 + $0x168] sm:$0xff] %vm640, %v585
        %687 = vst.msk [vmem:[%s178 + $0x170] sm:$0xff] %vm640, %v588
        %688 = vst.msk [vmem:[%s178 + $0x178] sm:$0xff] %vm640, %v591
        %689 = vst.msk [vmem:[%s178 + $0x180] sm:$0xff] %vm640, %v594
        %690 = vst.msk [vmem:[%s178 + $0x188] sm:$0xff] %vm640, %v597
        %691 = vst.msk [vmem:[%s178 + $0x190] sm:$0xff] %vm640, %v600
        %692 = vst.msk [vmem:[%s178 + $0x198] sm:$0xff] %vm640, %v603
        %693 = vst.msk [vmem:[%s178 + $0x1a0] sm:$0xff] %vm640, %v606
        %694 = vst.msk [vmem:[%s178 + $0x1a8] sm:$0xff] %vm640, %v609
        %695 = vst.msk [vmem:[%s178 + $0x1b0] sm:$0xff] %vm640, %v612
        %696 = vst.msk [vmem:[%s178 + $0x1b8] sm:$0xff] %vm640, %v615
        %697 = vst.msk [vmem:[%s178 + $0x1c0] sm:$0xff] %vm640, %v618
        %698 = vst.msk [vmem:[%s178 + $0x1c8] sm:$0xff] %vm640, %v621
        %699 = vst.msk [vmem:[%s178 + $0x1d0] sm:$0xff] %vm640, %v624
        %700 = vst.msk [vmem:[%s178 + $0x1d8] sm:$0xff] %vm640, %v627
        %701 = vst.msk [vmem:[%s178 + $0x1e0] sm:$0xff] %vm640, %v630
        %702 = vst.msk [vmem:[%s178 + $0x1e8] sm:$0xff] %vm640, %v633
        %703 = vst.msk [vmem:[%s178 + $0x1f0] sm:$0xff] %vm640, %v636
        %704 = vst.msk [vmem:[%s178 + $0x1f8] sm:$0xff] %vm640, %v639
        %s705 = smul.u32 64, %s17
        %p706 = scmp.lt.s32.totalorder %s705, 127
        %s707 = scalar_select %p706, %s705, 127
        %s708 = smul.addr %s707, 8
        %s709 = scalar_lea.vmem %s2, %s708
        // Predicated region
        $region37: #{tpu_custom_call.1} parent=27 // pred_check
          %p710 = pneg %p82
        $region38: #{tpu_custom_call.1} parent=27 // pred_check_branch
          %712 = sbr.rel (%p710) target = $region40
        $region39: #{tpu_custom_call.1} parent=27 // pred_region
          %s713 = smul.u32 64, %s17
        $region40: #{tpu_custom_call.1} parent=27 // pred_fallthru
          _
      $region28: #{tpu_custom_call.1} parent=5 // pred_fallthru
        _
      %p714 = scmp.le.s32.totalorder 2, %s12
      // Predicated region
      $region41: #{tpu_custom_call.1} parent=5 // pred_check
        %p715 = pneg %p714
      $region42: #{tpu_custom_call.1} parent=5 // pred_check_branch
        %717 = sbr.rel (%p715) target = $region44
      $region43: #{tpu_custom_call.1} parent=5 // pred_region
        %s718 = ssub.s32 %s12, 2
        // Predicated region
        $region45: #{tpu_custom_call.1} parent=43 // pred_check
          %p719 = pneg %p88
        $region46: #{tpu_custom_call.1} parent=43 // pred_check_branch
          %721 = sbr.rel (%p719) target = $region48
        $region47: #{tpu_custom_call.1} parent=43 // pred_region
          %s722 = smul.u32 64, %s18
          %p723 = scmp.lt.s32.totalorder %s722, 127
          %s724 = scalar_select %p723, %s722, 127
          %s725 = smul.addr %s724, 8
          %s726 = scalar_lea.vmem %s2, %s725
        $region48: #{tpu_custom_call.1} parent=43 // pred_fallthru
          _
      $region44: #{tpu_custom_call.1} parent=5 // pred_fallthru
        _
    $region6: #{tpu_custom_call.1} parent=1 // loop_footer
      %s16 = sadd.s32 1, %s12
    $region7: #{tpu_custom_call.1} parent=1 // loop_footer_branch
      %11 = sbr.rel target = $region3
    $region8: #{tpu_custom_call.1} parent=1 // loop_exit
      _
    %727 = vsyncpa [#allocation3], 1
    %s728 = scalar_lea.sflag [#allocation3], 1
    %729 = vsyncpa %s728, 1
    %730 = vsyncpa [#allocation5], 1
    %s731 = scalar_lea.sflag [#allocation5], 1
    %732 = vsyncpa %s731, 1

</llo_original>
